<compile_context>
chip_gen: v6e
topology: v6e:2x2x1
jax: 0.10.0
libtpu: 0.0.40
codegen_flags: <defaults>
</compile_context>

<pallas_src>
import jax
import jax.numpy as jnp
from jax.experimental import pallas as pl
from jax.experimental.pallas import tpu as pltpu

_LANES = 1024   # lane-dense last dim (multiple of 128)
_TR = 512       # 512 rows x 1024 lanes x 4 B = 2 MiB per f32 block


def _ste_kernel(thresh_ref, x_ref, o_ref):
    # thresh_ref lives in SMEM (scalar); x_ref / o_ref are VMEM row-tiles.
    t = thresh_ref[0]
    # Compare in float32 to match PyTorch's type-promotion semantics.
    o_ref[...] = (x_ref[...].astype(jnp.float32) > t).astype(jnp.float32)
    # TODO(synk): backward (hardtanh on incoming grad) belongs to autograd;
    # only the forward pass is implemented here, as the module specifies.


def straight_through_estimator(x, thresh):
    """out = (x > thresh).astype(float32), elementwise, same shape as x."""
    orig_shape = x.shape
    total = 1
    for d in orig_shape:
        total *= d

    # Lane-dense layout: (rows, _LANES). Pick a row-tile big enough to hit the
    # HBM roofline but small enough to double-buffer on all chip generations.
    rows_needed = pl.cdiv(total, _LANES)
    tr = min(_TR, ((rows_needed + 7) // 8) * 8)     # multiple of 8 sublanes
    rows = pl.cdiv(rows_needed, tr) * tr            # grid divides evenly
    padded_total = rows * _LANES

    x_flat = x.reshape(-1)
    if padded_total != total:
        x_flat = jnp.pad(x_flat, (0, padded_total - total))
    x2d = x_flat.reshape(rows, _LANES)

    thresh_arr = jnp.asarray(thresh, dtype=jnp.float32).reshape((1,))

    in_bytes = x2d.size * x2d.dtype.itemsize
    out_bytes = x2d.size * 4  # float32 output (matches PyTorch .float())

    out2d = pl.pallas_call(
        _ste_kernel,
        out_shape=jax.ShapeDtypeStruct((rows, _LANES), jnp.float32),
        grid=(rows // tr,),
        in_specs=[
            pl.BlockSpec(memory_space=pltpu.SMEM),          # scalar thresh
            pl.BlockSpec((tr, _LANES), lambda i: (i, 0)),   # x row-tile
        ],
        out_specs=pl.BlockSpec((tr, _LANES), lambda i: (i, 0)),
        compiler_params=pltpu.CompilerParams(
            dimension_semantics=("parallel",),
        ),
        cost_estimate=pl.CostEstimate(
            flops=padded_total,
            transcendentals=0,
            bytes_accessed=in_bytes + out_bytes,
        ),
    )(thresh_arr, x2d)

    return out2d.reshape(-1)[:total].reshape(orig_shape)


if __name__ == "__main__":
    key = jax.random.PRNGKey(0)
    B, C, H, W = 2, 4, 16, 16
    x = jax.random.normal(key, (B, C, H, W), dtype=jnp.float32)
    thresh = jnp.float32(0.1)

    out = straight_through_estimator(x, thresh)
    out = jax.block_until_ready(out)

    # quick correctness check against plain JAX reference
    ref = (x > thresh).astype(jnp.float32)
    assert out.shape == (B, C, H, W)
    assert out.dtype == jnp.float32
    assert bool(jnp.all(out == ref))

    print("KERNEL_OK")
</pallas_src>

<mosaic_0001>
module attributes {stable_mosaic.version = 11 : i64} {
  func.func @_ste_kernel(%arg0: i32, %arg1: memref<1xf32, #tpu.memory_space<smem>>, %arg2: memref<8x1024xf32, #tpu.memory_space<vmem>>, %arg3: memref<8x1024xf32, #tpu.memory_space<vmem>>) attributes {dimension_semantics = [#tpu.dimension_semantics<parallel>], iteration_bounds = array<i64: 1>, scalar_prefetch = 0 : i64, scratch_operands = 0 : i64, tpu.core_type = #tpu.core_type<tc>, window_params = [{transform_indices = @transform_0, window_bounds = array<i64: 1>}, {transform_indices = @transform_1, window_bounds = array<i64: 8, 1024>}, {transform_indices = @transform_2, window_bounds = array<i64: 8, 1024>}]} {
    %c0 = arith.constant 0 : index
    %0 = memref.load %arg1[%c0] : memref<1xf32, #tpu.memory_space<smem>>
    %c0_0 = arith.constant 0 : index
    %c0_1 = arith.constant 0 : index
    %1 = vector.load %arg2[%c0_0, %c0_1] : memref<8x1024xf32, #tpu.memory_space<vmem>>, vector<8x1024xf32>
    %2 = vector.broadcast %0 : f32 to vector<8x1024xf32>
    %3 = arith.cmpf ogt, %1, %2 : vector<8x1024xf32>
    %4 = arith.extui %3 : vector<8x1024xi1> to vector<8x1024xi32>
    %5 = arith.sitofp %4 : vector<8x1024xi32> to vector<8x1024xf32>
    %c0_2 = arith.constant 0 : index
    %c0_3 = arith.constant 0 : index
    %6 = vector.load %arg3[%c0_2, %c0_3] : memref<8x1024xf32, #tpu.memory_space<vmem>>, vector<8x1024xf32>
    tpu.vector_store %arg3[%c0_2, %c0_3], %5 {strides = array<i32>} : memref<8x1024xf32, #tpu.memory_space<vmem>>, vector<8x1024xf32>,
    return
  }
  func.func @transform_0(%arg0: i32) -> i32 {
    %c0_i32 = arith.constant 0 : i32
    %c0_i32_0 = arith.constant 0 : i32
    return %c0_i32 : i32
  }
  func.func @transform_1(%arg0: i32) -> (i32, i32) {
    %c0_i32 = arith.constant 0 : i32
    %c0_i32_0 = arith.constant 0 : i32
    return %arg0, %c0_i32 : i32, i32
  }
  func.func @transform_2(%arg0: i32) -> (i32, i32) {
    %c0_i32 = arith.constant 0 : i32
    %c0_i32_0 = arith.constant 0 : i32
    return %arg0, %c0_i32 : i32, i32
  }
}

</mosaic_0001>

<llo_original>
// kernel: tpu_custom_call.1
$region0: #{tpu_custom_call.1}
  #allocation0 [shape = 'u32[]', space=smem, size = 0x4, offset = 0x4, fixed_abs, tag = 'smem constant byte address 0x4 - core index']
  #allocation1 [shape = 'u32[144,128]{1,0:T(1,128)}', space=vmem, size = 0x12000, scoped, tag = 'internal scratch']
  #allocation2 [shape = 'f32[1]{0:T(128)S(6)}', space=smem, size = 0x200, scoped, tag = 'scoped memory for tpu_custom_call.1']
  %s0 = inlined_call_operand.<no memory space> [shape: f32[1], index: 0, kind: input, shape index: {}]
  %s1 = inlined_call_operand.hbm [shape: f32[8,1024], index: 1, kind: input, shape index: {}]
  %s2 = inlined_call_operand.hbm [shape: f32[8,1024], index: 2, kind: output, shape index: {}]
  %s3 = sld [smem:[#allocation0]]
  $region22: #{tpu_custom_call.1} parent=0
    _
  %s5 = ssub.s32 1, %s3
  %s6 = scalar_select 0, %s5, %s3
  %7 = sst [smem:[#allocation2]] %s0
  $region1: #{tpu_custom_call.1} parent=0
    #allocation3 [shape = 'u8[32768]{0}', space=vmem, size = 0x8000, scoped, tag = 'input window, operand 1, single buffered']
    #allocation4 [shape = 's32[1]{0}', space=sflag, size = 0x4, scoped, tag = 'scoped memory for tpu_custom_call.1']
    #allocation5 [shape = 's32[1]{0}', space=sflag, size = 0x4, scoped, tag = 'scoped memory for tpu_custom_call.1']
    #allocation6 [shape = 'u8[32768]{0}', space=vmem, size = 0x8000, scoped, tag = 'output window, operand 0, single buffered']
    %8 = vsyncpa [#allocation4], 0
    %9 = vsyncpa [#allocation5], 0
    // Predicated region
    $region2: #{tpu_custom_call.1} parent=1 // pred_check
      _
    $region3: #{tpu_custom_call.1} parent=1 // pred_check_branch
      %11 = sbr.rel (0) target = $region5
    $region4: #{tpu_custom_call.1} parent=1 // pred_region
      _
    $region5: #{tpu_custom_call.1} parent=1 // pred_fallthru
      _
    // Predicated region
    $region6: #{tpu_custom_call.1} parent=1 // pred_check
      _
    $region7: #{tpu_custom_call.1} parent=1 // pred_check_branch
      %13 = sbr.rel (0) target = $region9
    $region8: #{tpu_custom_call.1} parent=1 // pred_region
      %s15 = ssub.s32 1024, 1024
      %16 = vsyncadd [#allocation4], %s15
      %s18 = sshll.u32 [#allocation3], 4
      %s19 = int_to_ptr.vmem [resolvable:$true] %s18
      %21 = dma.hbm_to_vmem [thread:$0]  %s1, 1024, %s19, [#allocation4]
    $region9: #{tpu_custom_call.1} parent=1 // pred_fallthru
      _
    // Predicated region
    $region10: #{tpu_custom_call.1} parent=1 // pred_check
      _
    $region11: #{tpu_custom_call.1} parent=1 // pred_check_branch
      %23 = sbr.rel (0) target = $region13
    $region12: #{tpu_custom_call.1} parent=1 // pred_region
      %24 = dma.done [#allocation4], 1024
    $region13: #{tpu_custom_call.1} parent=1 // pred_fallthru
      _
    %s25 = sld [smem:[#allocation2]]
    %v26 = vld [vmem:[#allocation3] sm:$0xff]
    %v27 = vld [vmem:[#allocation3 + $0x8] sm:$0xff]
    %v28 = vld [vmem:[#allocation3 + $0x10] sm:$0xff]
    %v29 = vld [vmem:[#allocation3 + $0x18] sm:$0xff]
    %v30 = vld [vmem:[#allocation3 + $0x20] sm:$0xff]
    %v31 = vld [vmem:[#allocation3 + $0x28] sm:$0xff]
    %v32 = vld [vmem:[#allocation3 + $0x30] sm:$0xff]
    %v33 = vld [vmem:[#allocation3 + $0x38] sm:$0xff]
    %v34 = vstv %s25
    %vm35 = vcmp.gt.f32.partialorder %v26, %v34
    %vm36 = vcmp.gt.f32.partialorder %v27, %v34
    %vm37 = vcmp.gt.f32.partialorder %v28, %v34
    %vm38 = vcmp.gt.f32.partialorder %v29, %v34
    %vm39 = vcmp.gt.f32.partialorder %v30, %v34
    %vm40 = vcmp.gt.f32.partialorder %v31, %v34
    %vm41 = vcmp.gt.f32.partialorder %v32, %v34
    %vm42 = vcmp.gt.f32.partialorder %v33, %v34
    %v43 = vsel %vm35, 1, 0
    %v44 = vsel %vm36, 1, 0
    %v45 = vsel %vm37, 1, 0
    %v46 = vsel %vm38, 1, 0
    %v47 = vsel %vm39, 1, 0
    %v48 = vsel %vm40, 1, 0
    %v49 = vsel %vm41, 1, 0
    %v50 = vsel %vm42, 1, 0
    %v51 = vcvt.s32.f32 %v43
    %v52 = vcvt.s32.f32 %v44
    %v53 = vcvt.s32.f32 %v45
    %v54 = vcvt.s32.f32 %v46
    %v55 = vcvt.s32.f32 %v47
    %v56 = vcvt.s32.f32 %v48
    %v57 = vcvt.s32.f32 %v49
    %v58 = vcvt.s32.f32 %v50
    %59 = vst [vmem:[#allocation6] sm:$0xff] %v51
    %60 = vst [vmem:[#allocation6 + $0x8] sm:$0xff] %v52
    %61 = vst [vmem:[#allocation6 + $0x10] sm:$0xff] %v53
    %62 = vst [vmem:[#allocation6 + $0x18] sm:$0xff] %v54
    %63 = vst [vmem:[#allocation6 + $0x20] sm:$0xff] %v55
    %64 = vst [vmem:[#allocation6 + $0x28] sm:$0xff] %v56
    %65 = vst [vmem:[#allocation6 + $0x30] sm:$0xff] %v57
    %66 = vst [vmem:[#allocation6 + $0x38] sm:$0xff] %v58
    // Predicated region
    $region14: #{tpu_custom_call.1} parent=1 // pred_check
      _
    $region15: #{tpu_custom_call.1} parent=1 // pred_check_branch
      %68 = sbr.rel (0) target = $region17
    $region16: #{tpu_custom_call.1} parent=1 // pred_region
      %s70 = ssub.s32 1024, 1024
      %71 = vsyncadd [#allocation5], %s70
      %s73 = sshll.u32 [#allocation6], 4
      %s74 = int_to_ptr.vmem [resolvable:$true] %s73
      %76 = dma.vmem_to_hbm [thread:$0]  %s74, 1024, %s2, [#allocation5]
    $region17: #{tpu_custom_call.1} parent=1 // pred_fallthru
      _
    // Predicated region
    $region18: #{tpu_custom_call.1} parent=1 // pred_check
      _
    $region19: #{tpu_custom_call.1} parent=1 // pred_check_branch
      %78 = sbr.rel (0) target = $region21
    $region20: #{tpu_custom_call.1} parent=1 // pred_region
      %79 = dma.done [#allocation5], 1024
    $region21: #{tpu_custom_call.1} parent=1 // pred_fallthru
      _
    %80 = vsyncpa [#allocation4], 1
    %81 = vsyncpa [#allocation5], 1

</llo_original>
